<compile_context>
chip_gen: v7x
topology: tpu7x:2x2x1
jax: 0.10.0
libtpu: 0.0.40
codegen_flags: <defaults>
</compile_context>

<pallas_src>
import math

import jax
import jax.numpy as jnp
from jax import lax
from jax.experimental import pallas as pl
from jax.experimental.pallas import tpu as pltpu


def _mla_flash_kernel(q_ref, kv_ref, o_ref, m_sc, l_sc, acc_sc):
    """One (batch, q-tile, kv-tile) grid step of causal latent attention.

    q_ref : (1, tq, Lp)  scaled query-residual tile (x @ (Wq.T Wk) * head_size**-0.5)
    kv_ref: (1, tk, Lp)  latent (compressed KV) tile -- also acts as the value
    o_ref : (1, tq, Lp)  context tile = softmax(scores) @ kv   (Wv applied outside)
    """
    qi = pl.program_id(1)
    ki = pl.program_id(2)
    tq = q_ref.shape[1]
    tk = kv_ref.shape[1]

    @pl.when(ki == 0)
    def _init():
        m_sc[...] = jnp.full(m_sc.shape, -jnp.inf, dtype=m_sc.dtype)
        l_sc[...] = jnp.zeros(l_sc.shape, dtype=l_sc.dtype)
        acc_sc[...] = jnp.zeros(acc_sc.shape, dtype=acc_sc.dtype)

    # Causal tile skip: process only kv tiles that start at or before the last query
    # row of this q tile (tiles strictly above the diagonal contribute nothing).
    @pl.when(ki * tk <= qi * tq + (tq - 1))
    def _compute():
        q = q_ref[0]                                   # (tq, Lp)
        k = kv_ref[0]                                  # (tk, Lp)

        # scores (tq, tk): contract the shared latent dim natively -- no transposes.
        s = lax.dot_general(q, k, (((1,), (1,)), ((), ())),
                            preferred_element_type=jnp.float32)

        # Block-relative causal mask (applied to the f32 scores).
        row = lax.broadcasted_iota(jnp.int32, (tq, tk), 0) + qi * tq
        col = lax.broadcasted_iota(jnp.int32, (tq, tk), 1) + ki * tk
        s = jnp.where(col <= row, s, jnp.float32(-1e20))

        # Online softmax update (f32 throughout).
        m_prev = m_sc[...]                             # (tq, 1)
        m_new = jnp.maximum(m_prev, jnp.max(s, axis=-1, keepdims=True))
        alpha = jnp.exp(m_prev - m_new)
        p = jnp.exp(s - m_new)                         # (tq, tk) f32
        l_sc[...] = alpha * l_sc[...] + jnp.sum(p, axis=-1, keepdims=True)
        acc_sc[...] = alpha * acc_sc[...] + jnp.dot(
            p.astype(k.dtype), k, preferred_element_type=jnp.float32)
        m_sc[...] = m_new

    @pl.when(ki == pl.num_programs(2) - 1)
    def _finalize():
        inv_l = pl.reciprocal(l_sc[...], approx=True)  # EUP slot, ~free
        o_ref[0] = (acc_sc[...] * inv_l).astype(o_ref.dtype)


def latent_attention(x, w_dkv, w_q, w_k, w_v, *, head_size,
                     q_tile=128, kv_tile=128, compute_dtype=jnp.float32):
    """LatentAttention forward (kv_cache=None, mask=None). Returns (out, kv_cache).

    x: (B, T, E) float32. Weights follow nn.Linear convention (out_features, in_features):
      w_dkv (L, E), w_q (H, E), w_k (H, L), w_v (H, L) with H = head_size.
    """
    B, T, E = x.shape
    L = w_dkv.shape[0]
    H = w_k.shape[0]
    assert w_q.shape == (H, E) and w_k.shape == (H, L) and w_v.shape == (H, L)

    # ---- batch-independent prep, hoisted out of the kernel -------------------------
    # absorbed query weights with the softmax scale folded in: (E, L)
    absorbed_q = (w_q.T @ w_k) * (jnp.float32(head_size) ** jnp.float32(-0.5))

    # Latent projection (this IS the returned kv_cache) and the scaled query residual.
    # Plain batched GEMMs: computed once by XLA instead of once per q-tile in-kernel.
    kv = jnp.einsum("bte,le->btl", x, w_dkv)            # (B, T, L)
    q_res = jnp.einsum("bte,el->btl", x, absorbed_q)    # (B, T, L), already scaled

    # ---- lane-dense padding of the latent dim to a multiple of 128 -----------------
    Lp = ((L + 127) // 128) * 128
    q_p = q_res.astype(compute_dtype)
    kv_p = kv.astype(compute_dtype)
    if Lp != L:
        pad = ((0, 0), (0, 0), (0, Lp - L))
        q_p = jnp.pad(q_p, pad)                         # zero pad: scores unchanged
        kv_p = jnp.pad(kv_p, pad)

    tq = min(q_tile, T)
    tk = min(kv_tile, T)
    assert T % tq == 0 and T % tk == 0, "T must be divisible by the tile sizes"
    n_q, n_k = T // tq, T // tk

    ctx = pl.pallas_call(
        _mla_flash_kernel,
        out_shape=jax.ShapeDtypeStruct((B, T, Lp), jnp.float32),
        grid_spec=pltpu.PrefetchScalarGridSpec(
            num_scalar_prefetch=0,
            grid=(B, n_q, n_k),                         # kv (reduction) axis last
            in_specs=[
                pl.BlockSpec((1, tq, Lp), lambda b, qi, ki: (b, qi, 0)),   # q_res tile
                pl.BlockSpec((1, tk, Lp), lambda b, qi, ki: (b, ki, 0)),   # kv tile
            ],
            out_specs=pl.BlockSpec((1, tq, Lp), lambda b, qi, ki: (b, qi, 0)),
            scratch_shapes=[
                pltpu.VMEM((tq, 1), jnp.float32),       # running max  m
                pltpu.VMEM((tq, 1), jnp.float32),       # running sum  l
                pltpu.VMEM((tq, Lp), jnp.float32),      # context accumulator
            ],
        ),
        compiler_params=pltpu.CompilerParams(
            dimension_semantics=("parallel", "parallel", "arbitrary"),
            vmem_limit_bytes=32 * 1024 * 1024,
        ),
    )(q_p, kv_p)

    # Tiny H-wide value projection (H = head_size << 128 lanes) applied as one fused
    # XLA matmul instead of a lane-sparse in-kernel GEMM:  out = (probs @ kv) @ Wv.T
    out = jnp.einsum("btl,hl->bth", ctx[..., :L], w_v)
    return out, kv


def latent_attention_ref(x, w_dkv, w_q, w_k, w_v, *, head_size):
    """Pure-JAX reference mirroring the PyTorch forward (kv_cache=None, mask=None)."""
    kv = jnp.einsum("bte,le->btl", x, w_dkv)
    absorbed_q = w_q.T @ w_k                                   # (E, L)
    q_res = jnp.einsum("bte,el->btl", x, absorbed_q)
    scores = jnp.einsum("btl,bsl->bts", q_res, kv) * (head_size ** -0.5)
    T = x.shape[1]
    tril = jnp.tril(jnp.ones((T, T), jnp.float32))
    scores = jnp.where(tril == 0, jnp.float32(-1e20), scores)
    probs = jax.nn.softmax(scores, axis=-1)
    v = jnp.einsum("btl,hl->bth", kv, w_v)
    out = jnp.einsum("bts,bsh->bth", probs, v)
    return out, kv


if __name__ == "__main__":
    def linear_init(k, out_f, in_f):
        # nn.Linear(in, out, bias=False) -> weight (out, in); deterministic uniform init
        bound = 1.0 / math.sqrt(in_f)
        return jax.random.uniform(k, (out_f, in_f), jnp.float32, -bound, bound)

    def make_inputs(key, B, T, E, H, L):
        kx, kdkv, kq, kk, kvw = jax.random.split(key, 5)
        x = jax.random.normal(kx, (B, T, E), jnp.float32)
        return (x,
                linear_init(kdkv, L, E),   # W_dkv
                linear_init(kq, H, E),     # query
                linear_init(kk, H, L),     # W_k
                linear_init(kvw, H, L))    # W_v

    key = jax.random.PRNGKey(0)
    k1, k2 = jax.random.split(key)

    # ---- config 1: the module's small shapes (single-tile path) --------------------
    B, T, E, heads, L = 2, 8, 32, 4, 16
    H = E // heads                                    # head_size = 8
    x, w_dkv, w_q, w_k, w_v = make_inputs(k1, B, T, E, H, L)
    out, kv_cache = latent_attention(x, w_dkv, w_q, w_k, w_v, head_size=H)
    out = jax.block_until_ready(out)
    kv_cache = jax.block_until_ready(kv_cache)
    out_ref, kv_ref = latent_attention_ref(x, w_dkv, w_q, w_k, w_v, head_size=H)
    assert out.shape == (B, T, H) and kv_cache.shape == (B, T, L)
    assert jnp.allclose(out, out_ref, atol=5e-3, rtol=5e-3)
    assert jnp.allclose(kv_cache, kv_ref, atol=1e-5, rtol=1e-5)

    # ---- config 2: multi-tile causal path (2x2 q/kv tiles), f32 and bf16 MXU -------
    B, T, E, heads, L = 2, 256, 128, 4, 64
    H = E // heads                                    # head_size = 32
    x, w_dkv, w_q, w_k, w_v = make_inputs(k2, B, T, E, H, L)
    out_ref, kv_ref = latent_attention_ref(x, w_dkv, w_q, w_k, w_v, head_size=H)

    out32, kv32 = latent_attention(x, w_dkv, w_q, w_k, w_v, head_size=H,
                                   q_tile=128, kv_tile=128)
    out32 = jax.block_until_ready(out32)
    assert jnp.allclose(out32, out_ref, atol=5e-3, rtol=5e-3)
    assert jnp.allclose(kv32, kv_ref, atol=1e-5, rtol=1e-5)

    out16, _ = latent_attention(x, w_dkv, w_q, w_k, w_v, head_size=H,
                                q_tile=128, kv_tile=128,
                                compute_dtype=jnp.bfloat16)
    out16 = jax.block_until_ready(out16)
    assert jnp.allclose(out16, out_ref, atol=6e-2, rtol=6e-2)

    print("KERNEL_OK")
</pallas_src>

<mosaic_0001>
module attributes {stable_mosaic.version = 11 : i64} {
  func.func @_mla_flash_kernel(%arg0: i32, %arg1: i32, %arg2: i32, %arg3: memref<1x8x128xf32, #tpu.memory_space<vmem>>, %arg4: memref<1x8x128xf32, #tpu.memory_space<vmem>>, %arg5: memref<1x8x128xf32, #tpu.memory_space<vmem>>, %arg6: memref<8x1xf32, #tpu.memory_space<vmem>>, %arg7: memref<8x1xf32, #tpu.memory_space<vmem>>, %arg8: memref<8x128xf32, #tpu.memory_space<vmem>>) attributes {dimension_semantics = [#tpu.dimension_semantics<parallel>, #tpu.dimension_semantics<parallel>, #tpu.dimension_semantics<arbitrary>], iteration_bounds = array<i64: 2, 1, 1>, scalar_prefetch = 0 : i64, scratch_operands = 3 : i64, tpu.core_type = #tpu.core_type<tc>, window_params = [{transform_indices = @transform_0, window_bounds = array<i64: 1, 8, 128>}, {transform_indices = @transform_1, window_bounds = array<i64: 1, 8, 128>}, {transform_indices = @transform_2, window_bounds = array<i64: 1, 8, 128>}]} {
    %c0_i32 = arith.constant 0 : i32
    %0 = arith.cmpi eq, %arg2, %c0_i32 : i32
    %1 = arith.extui %0 : i1 to i32
    %c0_i32_0 = arith.constant 0 : i32
    %2 = arith.cmpi ne, %1, %c0_i32_0 : i32
    scf.if %2 {
      %cst = arith.constant 0xFF800000 : f32
      %12 = vector.broadcast %cst : f32 to vector<8x1xf32>
      %c0 = arith.constant 0 : index
      %c0_5 = arith.constant 0 : index
      %13 = vector.load %arg6[%c0, %c0_5] : memref<8x1xf32, #tpu.memory_space<vmem>>, vector<8x1xf32>
      tpu.vector_store %arg6[%c0, %c0_5], %12 {strides = array<i32>} : memref<8x1xf32, #tpu.memory_space<vmem>>, vector<8x1xf32>,
      %cst_6 = arith.constant 0.000000e+00 : f32
      %14 = vector.broadcast %cst_6 : f32 to vector<8x1xf32>
      %c0_7 = arith.constant 0 : index
      %c0_8 = arith.constant 0 : index
      %15 = vector.load %arg7[%c0_7, %c0_8] : memref<8x1xf32, #tpu.memory_space<vmem>>, vector<8x1xf32>
      tpu.vector_store %arg7[%c0_7, %c0_8], %14 {strides = array<i32>} : memref<8x1xf32, #tpu.memory_space<vmem>>, vector<8x1xf32>,
      %cst_9 = arith.constant 0.000000e+00 : f32
      %16 = vector.broadcast %cst_9 : f32 to vector<8x128xf32>
      %c0_10 = arith.constant 0 : index
      %c0_11 = arith.constant 0 : index
      %17 = vector.load %arg8[%c0_10, %c0_11] : memref<8x128xf32, #tpu.memory_space<vmem>>, vector<8x128xf32>
      tpu.vector_store %arg8[%c0_10, %c0_11], %16 {strides = array<i32>} : memref<8x128xf32, #tpu.memory_space<vmem>>, vector<8x128xf32>,
    } else {
    }
    %c8_i32 = arith.constant 8 : i32
    %3 = arith.muli %arg2, %c8_i32 : i32
    %c8_i32_1 = arith.constant 8 : i32
    %4 = arith.muli %arg1, %c8_i32_1 : i32
    %c7_i32 = arith.constant 7 : i32
    %5 = arith.addi %4, %c7_i32 : i32
    %6 = arith.cmpi sle, %3, %5 : i32
    %7 = arith.extui %6 : i1 to i32
    %c0_i32_2 = arith.constant 0 : i32
    %8 = arith.cmpi ne, %7, %c0_i32_2 : i32
    scf.if %8 {
      %c0 = arith.constant 0 : index
      %c0_5 = arith.constant 0 : index
      %c0_6 = arith.constant 0 : index
      %12 = vector.load %arg3[%c0, %c0_5, %c0_6] : memref<1x8x128xf32, #tpu.memory_space<vmem>>, vector<1x8x128xf32>
      %13 = vector.shape_cast %12 : vector<1x8x128xf32> to vector<8x128xf32>
      %c0_7 = arith.constant 0 : index
      %c0_8 = arith.constant 0 : index
      %c0_9 = arith.constant 0 : index
      %14 = vector.load %arg4[%c0_7, %c0_8, %c0_9] : memref<1x8x128xf32, #tpu.memory_space<vmem>>, vector<1x8x128xf32>
      %15 = vector.shape_cast %14 : vector<1x8x128xf32> to vector<8x128xf32>
      %cst = arith.constant dense<0.000000e+00> : vector<8x8xf32>
      %16 = tpu.matmul %13, %15, %cst {dimension_numbers = #tpu.dot_dimension_numbers<[1], [1], [0], [0], [0, 0, 1, 0], [], []>} : vector<8x128xf32>, vector<8x128xf32>, vector<8x8xf32> -> vector<8x8xf32>
      %17 = tpu.iota {dimensions = array<i32: 0>} : vector<8x8xi32>
      %c8_i32_10 = arith.constant 8 : i32
      %18 = arith.muli %arg1, %c8_i32_10 : i32
      %19 = vector.broadcast %18 : i32 to vector<8x8xi32>
      %20 = arith.addi %17, %19 : vector<8x8xi32>
      %21 = tpu.iota {dimensions = array<i32: 1>} : vector<8x8xi32>
      %c8_i32_11 = arith.constant 8 : i32
      %22 = arith.muli %arg2, %c8_i32_11 : i32
      %23 = vector.broadcast %22 : i32 to vector<8x8xi32>
      %24 = arith.addi %21, %23 : vector<8x8xi32>
      %25 = arith.cmpi sle, %24, %20 : vector<8x8xi32>
      %cst_12 = arith.constant -1.000000e+20 : f32
      %26 = vector.broadcast %cst_12 : f32 to vector<8x8xf32>
      %27 = arith.select %25, %16, %26 : vector<8x8xi1>, vector<8x8xf32>
      %c0_13 = arith.constant 0 : index
      %c0_14 = arith.constant 0 : index
      %28 = vector.load %arg6[%c0_13, %c0_14] : memref<8x1xf32, #tpu.memory_space<vmem>>, vector<8x1xf32>
      %cst_15 = arith.constant dense<0xFF800000> : vector<8xf32>
      %29 = vector.multi_reduction <maximumf>, %27, %cst_15 [1] : vector<8x8xf32> to vector<8xf32>
      %30 = vector.shape_cast %29 : vector<8xf32> to vector<8x1xf32>
      %31 = arith.maximumf %28, %30 : vector<8x1xf32>
      %32 = arith.subf %28, %31 : vector<8x1xf32>
      %33 = math.exp %32 : vector<8x1xf32>
      %34 = vector.broadcast %31 : vector<8x1xf32> to vector<8x8xf32>
      %35 = arith.subf %27, %34 : vector<8x8xf32>
      %36 = math.exp %35 : vector<8x8xf32>
      %c0_16 = arith.constant 0 : index
      %c0_17 = arith.constant 0 : index
      %37 = vector.load %arg7[%c0_16, %c0_17] : memref<8x1xf32, #tpu.memory_space<vmem>>, vector<8x1xf32>
      %38 = arith.mulf %33, %37 : vector<8x1xf32>
      %cst_18 = arith.constant dense<0.000000e+00> : vector<8xf32>
      %39 = vector.multi_reduction <add>, %36, %cst_18 [1] : vector<8x8xf32> to vector<8xf32>
      %40 = vector.shape_cast %39 : vector<8xf32> to vector<8x1xf32>
      %41 = arith.addf %38, %40 : vector<8x1xf32>
      %c0_19 = arith.constant 0 : index
      %c0_20 = arith.constant 0 : index
      %42 = vector.load %arg7[%c0_19, %c0_20] : memref<8x1xf32, #tpu.memory_space<vmem>>, vector<8x1xf32>
      tpu.vector_store %arg7[%c0_19, %c0_20], %41 {strides = array<i32>} : memref<8x1xf32, #tpu.memory_space<vmem>>, vector<8x1xf32>,
      %c0_21 = arith.constant 0 : index
      %c0_22 = arith.constant 0 : index
      %43 = vector.load %arg8[%c0_21, %c0_22] : memref<8x128xf32, #tpu.memory_space<vmem>>, vector<8x128xf32>
      %44 = vector.broadcast %33 : vector<8x1xf32> to vector<8x128xf32>
      %45 = arith.mulf %44, %43 : vector<8x128xf32>
      %cst_23 = arith.constant dense<0.000000e+00> : vector<8x128xf32>
      %46 = tpu.matmul %36, %15, %cst_23 {dimension_numbers = #tpu.dot_dimension_numbers<[1], [0], [0], [1], [0, 0, 1, 1], [], []>} : vector<8x8xf32>, vector<8x128xf32>, vector<8x128xf32> -> vector<8x128xf32>
      %47 = arith.addf %45, %46 : vector<8x128xf32>
      %c0_24 = arith.constant 0 : index
      %c0_25 = arith.constant 0 : index
      %48 = vector.load %arg8[%c0_24, %c0_25] : memref<8x128xf32, #tpu.memory_space<vmem>>, vector<8x128xf32>
      tpu.vector_store %arg8[%c0_24, %c0_25], %47 {strides = array<i32>} : memref<8x128xf32, #tpu.memory_space<vmem>>, vector<8x128xf32>,
      %c0_26 = arith.constant 0 : index
      %c0_27 = arith.constant 0 : index
      %49 = vector.load %arg6[%c0_26, %c0_27] : memref<8x1xf32, #tpu.memory_space<vmem>>, vector<8x1xf32>
      tpu.vector_store %arg6[%c0_26, %c0_27], %31 {strides = array<i32>} : memref<8x1xf32, #tpu.memory_space<vmem>>, vector<8x1xf32>,
    } else {
    }
    %c0_i32_3 = arith.constant 0 : i32
    %9 = arith.cmpi eq, %arg2, %c0_i32_3 : i32
    %10 = arith.extui %9 : i1 to i32
    %c0_i32_4 = arith.constant 0 : i32
    %11 = arith.cmpi ne, %10, %c0_i32_4 : i32
    scf.if %11 {
      %c0 = arith.constant 0 : index
      %c0_5 = arith.constant 0 : index
      %12 = vector.load %arg7[%c0, %c0_5] : memref<8x1xf32, #tpu.memory_space<vmem>>, vector<8x1xf32>
      %13 = tpu.reciprocal %12 {approx = true} : vector<8x1xf32> -> vector<8x1xf32>
      %c0_6 = arith.constant 0 : index
      %c0_7 = arith.constant 0 : index
      %14 = vector.load %arg8[%c0_6, %c0_7] : memref<8x128xf32, #tpu.memory_space<vmem>>, vector<8x128xf32>
      %15 = vector.broadcast %13 : vector<8x1xf32> to vector<8x128xf32>
      %16 = arith.mulf %14, %15 : vector<8x128xf32>
      %c0_8 = arith.constant 0 : index
      %c0_9 = arith.constant 0 : index
      %c0_10 = arith.constant 0 : index
      %17 = vector.load %arg5[%c0_8, %c0_9, %c0_10] : memref<1x8x128xf32, #tpu.memory_space<vmem>>, vector<1x8x128xf32>
      %18 = vector.shape_cast %17 : vector<1x8x128xf32> to vector<8x128xf32>
      %19 = vector.shape_cast %16 : vector<8x128xf32> to vector<1x8x128xf32>
      tpu.vector_store %arg5[%c0_8, %c0_9, %c0_10], %19 {strides = array<i32>} : memref<1x8x128xf32, #tpu.memory_space<vmem>>, vector<1x8x128xf32>,
    } else {
    }
    return
  }
  func.func @transform_0(%arg0: i32, %arg1: i32, %arg2: i32) -> (i32, i32, i32) {
    %c0_i32 = arith.constant 0 : i32
    %c0_i32_0 = arith.constant 0 : i32
    return %arg0, %arg1, %c0_i32 : i32, i32, i32
  }
  func.func @transform_1(%arg0: i32, %arg1: i32, %arg2: i32) -> (i32, i32, i32) {
    %c0_i32 = arith.constant 0 : i32
    %c0_i32_0 = arith.constant 0 : i32
    return %arg0, %arg2, %c0_i32 : i32, i32, i32
  }
  func.func @transform_2(%arg0: i32, %arg1: i32, %arg2: i32) -> (i32, i32, i32) {
    %c0_i32 = arith.constant 0 : i32
    %c0_i32_0 = arith.constant 0 : i32
    return %arg0, %arg1, %c0_i32 : i32, i32, i32
  }
}

</mosaic_0001>

<llo_original>
// kernel: tpu_custom_call.1
$region0: #{tpu_custom_call.1}
  #allocation0 [shape = 'u32[]', space=smem, size = 0x4, offset = 0x4, fixed_abs, tag = 'smem constant byte address 0x4 - core index']
  #allocation1 [shape = 'u32[144,128]{1,0:T(1,128)}', space=vmem, size = 0x12000, scoped, tag = 'internal scratch']
  #allocation2 [shape = 'f32[8,1]{1,0:T(8,128)}', space=vmem, size = 0x1000, scoped, tag = 'scratch operand']
  #allocation3 [shape = 'f32[8,1]{1,0:T(8,128)}', space=vmem, size = 0x1000, scoped, tag = 'scratch operand']
  #allocation4 [shape = 'f32[8,128]{1,0:T(8,128)}', space=vmem, size = 0x1000, scoped, tag = 'scratch operand']
  %s0 = inlined_call_operand.hbm [shape: f32[2,8,128], index: 0, kind: input, shape index: {}]
  %s1 = inlined_call_operand.hbm [shape: f32[2,8,128], index: 1, kind: input, shape index: {}]
  %s2 = inlined_call_operand.hbm [shape: f32[2,8,128], index: 2, kind: output, shape index: {}]
  %s3 = sld [smem:[#allocation0]]
  $region61: #{tpu_custom_call.1} parent=0
    _
  %s5 = ssub.s32 1, %s3
  %s6 = scalar_select 0, %s5, %s3
  $region1: #{tpu_custom_call.1} parent=0
    #allocation5 [shape = 'u8[8192]{0}', space=vmem, size = 0x2000, scoped, tag = 'input window, operand 0']
    #allocation6 [shape = 's32[2]{0}', space=sflag, size = 0x8, scoped, tag = 'scoped memory for tpu_custom_call.1']
    #allocation7 [shape = 's32[2]{0}', space=sflag, size = 0x8, scoped, tag = 'scoped memory for tpu_custom_call.1']
    #allocation8 [shape = 'u8[8192]{0}', space=vmem, size = 0x2000, scoped, tag = 'input window, operand 1']
    #allocation9 [shape = 's32[2]{0}', space=sflag, size = 0x8, scoped, tag = 'scoped memory for tpu_custom_call.1']
    #allocation10 [shape = 'u8[8192]{0}', space=vmem, size = 0x2000, scoped, tag = 'output window, operand 0']
    %7 = vsyncpa [#allocation6], 0
    %s8 = scalar_lea.sflag [#allocation6], 1
    %9 = vsyncpa %s8, 0
    %10 = vsyncpa [#allocation9], 0
    %s11 = scalar_lea.sflag [#allocation9], 1
    %12 = vsyncpa %s11, 0
    %13 = vsyncpa [#allocation7], 0
    %s14 = scalar_lea.sflag [#allocation7], 1
    %15 = vsyncpa %s14, 0
    loop: start=0, step=1, limit=4
    $region2: #{tpu_custom_call.1} parent=1 // loop_pre_header
      _
    $region3: #{tpu_custom_call.1} parent=1 // loop_header
      %s17 = sphi 0, %s21
      %p18 = scmp.ge.s32.totalorder %s17, 4
      %s24 = sphi 0, %s43
      %s25 = sphi 0, %s39
      %s26 = sphi 0, %s35
      %s27 = sphi 0, %s24
      %s28 = sphi 0, %s25
      %s29 = sphi 0, %s26
      %s30 = sphi 0, %s27
      %s31 = sphi 0, %s28
      %s32 = sphi 0, %s29
      %s48 = sphi 0, %s50
      %s51 = sphi 0, %s48
      %s52 = sphi 0, %s51
      %s68 = sphi 0, %s52
      %s76 = sphi 0, %s78
      %s79 = sphi 0, %s76
      %s80 = sphi 0, %s79
      %s96 = sphi 0, %s80
      %s104 = sphi 0, %s106
      %s107 = sphi 0, %s104
      %s108 = sphi 0, %s107
      %s124 = sphi 0, %s108
    $region4: #{tpu_custom_call.1} parent=1 // loop_header_branch
      %20 = sbr.rel (%p18) target = $region8
    $region5: #{tpu_custom_call.1} parent=1 // loop_body
      %s22 = ssub.s32 %s17, 1
      %s23 = ssub.s32 %s17, 2
      %s33 = sadd.s32 1, %s26
      %p34 = scmp.ge.s32.totalorder %s33, 1
      %s35 = scalar_select %p34, 0, %s33
      %s36 = sadd.s32 1, %s25
      %s37 = scalar_select %p34, %s36, %s25
      %p38 = scmp.ge.s32.totalorder %s37, 1
      %s39 = scalar_select %p38, 0, %s37
      %s40 = sadd.s32 1, %s24
      %s41 = scalar_select %p38, %s40, %s24
      %p42 = scmp.ge.s32.totalorder %s41, 2
      %s43 = scalar_select %p42, 0, %s41
      %s44 = ssub.s32 %s24, %s43
      %s45 = ssub.s32 %s25, %s39
      %s46 = sor.u32 %s44, %s45
      %p47 = scmp.eq.s32.totalorder %s46, 0
      %s49 = sadd.s32 %s48, 1
      %s50 = scalar_select %p47, %s48, %s49
      %p53 = pneg %p47
      %p54 = scmp.eq.s32.totalorder %s17, 1
      %p55 = por %p53, %p54
      %p56 = scmp.ne.s32.totalorder %s48, %s51
      %p57 = scmp.eq.s32.totalorder %s17, 0
      %p58 = por %p56, %p57
      %p59 = scmp.ne.s32.totalorder %s48, %s51
      %p60 = scmp.eq.s32.totalorder %s22, 1
      %p61 = por %p59, %p60
      %p62 = scmp.ne.s32.totalorder %s51, %s52
      %p63 = scmp.eq.s32.totalorder %s22, 0
      %p64 = por %p62, %p63
      %p65 = scmp.ne.s32.totalorder %s51, %s52
      %p66 = scmp.eq.s32.totalorder %s23, 1
      %p67 = por %p65, %p66
      %p69 = scmp.ne.s32.totalorder %s52, %s68
      %p70 = scmp.eq.s32.totalorder %s23, 0
      %p71 = por %p69, %p70
      %s72 = ssub.s32 %s24, %s43
      %s73 = ssub.s32 %s26, %s35
      %s74 = sor.u32 %s72, %s73
      %p75 = scmp.eq.s32.totalorder %s74, 0
      %s77 = sadd.s32 %s76, 1
      %s78 = scalar_select %p75, %s76, %s77
      %p81 = pneg %p75
      %p82 = scmp.eq.s32.totalorder %s17, 1
      %p83 = por %p81, %p82
      %p84 = scmp.ne.s32.totalorder %s76, %s79
      %p85 = scmp.eq.s32.totalorder %s17, 0
      %p86 = por %p84, %p85
      %p87 = scmp.ne.s32.totalorder %s76, %s79
      %p88 = scmp.eq.s32.totalorder %s22, 1
      %p89 = por %p87, %p88
      %p90 = scmp.ne.s32.totalorder %s79, %s80
      %p91 = scmp.eq.s32.totalorder %s22, 0
      %p92 = por %p90, %p91
      %p93 = scmp.ne.s32.totalorder %s79, %s80
      %p94 = scmp.eq.s32.totalorder %s23, 1
      %p95 = por %p93, %p94
      %p97 = scmp.ne.s32.totalorder %s80, %s96
      %p98 = scmp.eq.s32.totalorder %s23, 0
      %p99 = por %p97, %p98
      %s100 = ssub.s32 %s24, %s43
      %s101 = ssub.s32 %s25, %s39
      %s102 = sor.u32 %s100, %s101
      %p103 = scmp.eq.s32.totalorder %s102, 0
      %s105 = sadd.s32 %s104, 1
      %s106 = scalar_select %p103, %s104, %s105
      %p109 = pneg %p103
      %p110 = scmp.eq.s32.totalorder %s17, 1
      %p111 = por %p109, %p110
      %p112 = scmp.ne.s32.totalorder %s104, %s107
      %p113 = scmp.eq.s32.totalorder %s17, 0
      %p114 = por %p112, %p113
      %p115 = scmp.ne.s32.totalorder %s104, %s107
      %p116 = scmp.eq.s32.totalorder %s22, 1
      %p117 = por %p115, %p116
      %p118 = scmp.ne.s32.totalorder %s107, %s108
      %p119 = scmp.eq.s32.totalorder %s22, 0
      %p120 = por %p118, %p119
      %p121 = scmp.ne.s32.totalorder %s107, %s108
      %p122 = scmp.eq.s32.totalorder %s23, 1
      %p123 = por %p121, %p122
      %p125 = scmp.ne.s32.totalorder %s108, %s124
      %p126 = scmp.eq.s32.totalorder %s23, 0
      %p127 = por %p125, %p126
      %p128 = scmp.le.s32.totalorder 1, %s17
      %p129 = scmp.lt.s32.totalorder %s17, 3
      %p130 = pnand %p128, %p129
      %p131 = pneg %p130
      // Predicated region
      $region9: #{tpu_custom_call.1} parent=5 // pred_check
        _
      $region10: #{tpu_custom_call.1} parent=5 // pred_check_branch
        %133 = sbr.rel (%p130) target = $region12
      $region11: #{tpu_custom_call.1} parent=5 // pred_region
        %s134 = ssub.s32 %s17, 1
      $region12: #{tpu_custom_call.1} parent=5 // pred_fallthru
        _
      %p135 = scmp.lt.s32.totalorder %s17, 2
      // Predicated region
      $region13: #{tpu_custom_call.1} parent=5 // pred_check
        %p136 = pneg %p135
      $region14: #{tpu_custom_call.1} parent=5 // pred_check_branch
        %138 = sbr.rel (%p136) target = $region16
      $region15: #{tpu_custom_call.1} parent=5 // pred_region
        // Predicated region
        $region17: #{tpu_custom_call.1} parent=15 // pred_check
          %p139 = pneg %p58
        $region18: #{tpu_custom_call.1} parent=15 // pred_check_branch
          %141 = sbr.rel (%p139) target = $region20
        $region19: #{tpu_custom_call.1} parent=15 // pred_region
          %s142 = sand.u32 %s48, 1
          %s143 = scalar_lea.sflag [#allocation6], %s142
          %s144 = sand.u32 %s48, 1
          %s145 = smul.addr %s144, 8
          %s146 = scalar_lea.vmem [#allocation5], %s145
          %s148 = ssub.s32 128, 128
          %149 = vsyncadd %s143, %s148
          %s150 = sadd.s32 %s25, %s24
          %s151 = smul.addr %s150, 128
          %s152 = scalar_lea.hbm %s0, %s151
          %s154 = sshll.u32 %s146, 4
          %s155 = int_to_ptr.vmem [resolvable:$true] %s154
          %157 = dma.hbm_to_vmem [thread:$0]  %s152, 128, %s155, %s143
        $region20: #{tpu_custom_call.1} parent=15 // pred_fallthru
          _
        // Predicated region
        $region21: #{tpu_custom_call.1} parent=15 // pred_check
          %p158 = pneg %p86
        $region22: #{tpu_custom_call.1} parent=15 // pred_check_branch
          %160 = sbr.rel (%p158) target = $region24
        $region23: #{tpu_custom_call.1} parent=15 // pred_region
          %s161 = sand.u32 %s76, 1
          %s162 = scalar_lea.sflag [#allocation9], %s161
          %s163 = sand.u32 %s76, 1
          %s164 = smul.addr %s163, 8
          %s165 = scalar_lea.vmem [#allocation8], %s164
          %s167 = ssub.s32 128, 128
          %168 = vsyncadd %s162, %s167
          %s169 = sadd.s32 %s26, %s24
          %s170 = smul.addr %s169, 128
          %s171 = scalar_lea.hbm %s1, %s170
          %s173 = sshll.u32 %s165, 4
          %s174 = int_to_ptr.vmem [resolvable:$true] %s173
          %176 = dma.hbm_to_vmem [thread:$0]  %s171, 128, %s174, %s162
        $region24: #{tpu_custom_call.1} parent=15 // pred_fallthru
          _
      $region16: #{tpu_custom_call.1} parent=5 // pred_fallthru
        _
      %p177 = scmp.le.s32.totalorder 1, %s17
      %p178 = scmp.lt.s32.totalorder %s17, 3
      %p179 = pnand %p177, %p178
      %p180 = pneg %p179
      // Predicated region
      $region25: #{tpu_custom_call.1} parent=5 // pred_check
        _
      $region26: #{tpu_custom_call.1} parent=5 // pred_check_branch
        %182 = sbr.rel (%p179) target = $region28
      $region27: #{tpu_custom_call.1} parent=5 // pred_region
        %s183 = ssub.s32 %s17, 1
        %s184 = sand.u32 %s51, 1
        %s185 = scalar_lea.sflag [#allocation6], %s184
        %s186 = sand.u32 %s51, 1
        %s187 = smul.addr %s186, 8
        %s188 = scalar_lea.vmem [#allocation5], %s187
        // Predicated region
        $region29: #{tpu_custom_call.1} parent=27 // pred_check
          %p189 = pneg %p64
        $region30: #{tpu_custom_call.1} parent=27 // pred_check_branch
          %191 = sbr.rel (%p189) target = $region32
        $region31: #{tpu_custom_call.1} parent=27 // pred_region
          %192 = dma.done %s185, 128
        $region32: #{tpu_custom_call.1} parent=27 // pred_fallthru
          _
        %s193 = sand.u32 %s79, 1
        %s194 = scalar_lea.sflag [#allocation9], %s193
        %s195 = sand.u32 %s79, 1
        %s196 = smul.addr %s195, 8
        %s197 = scalar_lea.vmem [#allocation8], %s196
        // Predicated region
        $region33: #{tpu_custom_call.1} parent=27 // pred_check
          %p198 = pneg %p92
        $region34: #{tpu_custom_call.1} parent=27 // pred_check_branch
          %200 = sbr.rel (%p198) target = $region36
        $region35: #{tpu_custom_call.1} parent=27 // pred_region
          %201 = dma.done %s194, 128
        $region36: #{tpu_custom_call.1} parent=27 // pred_fallthru
          _
        %s202 = sand.u32 %s51, 1
        %s203 = scalar_lea.sflag [#allocation6], %s202
        %s204 = sand.u32 %s51, 1
        %s205 = smul.addr %s204, 8
        %s206 = scalar_lea.vmem [#allocation5], %s205
        %p207 = pneg %p64
        %p208 = pneg %p61
        %s209 = sand.u32 %s79, 1
        %s210 = scalar_lea.sflag [#allocation9], %s209
        %s211 = sand.u32 %s79, 1
        %s212 = smul.addr %s211, 8
        %s213 = scalar_lea.vmem [#allocation8], %s212
        %p214 = pneg %p92
        %p215 = pneg %p89
        %p216 = pneg %p120
        %p217 = pneg %p117
        %s218 = sand.u32 %s107, 1
        %s219 = scalar_lea.sflag [#allocation7], %s218
        %s220 = sand.u32 %s107, 1
        %s221 = smul.addr %s220, 8
        %s222 = scalar_lea.vmem [#allocation10], %s221
        %p223 = scmp.eq.s32.totalorder %s29, 0
        // Predicated region
        $region37: #{tpu_custom_call.1} parent=27 // pred_check
          %p224 = pneg %p223
        $region38: #{tpu_custom_call.1} parent=27 // pred_check_branch
          %226 = sbr.rel (%p224) target = $region40
        $region39: #{tpu_custom_call.1} parent=27 // pred_region
          %vm227 = vcmask 7168
          %228 = vst.msk [vmem:[#allocation2] sm:$0xff] %vm227, -inf
          %229 = vst.msk [vmem:[#allocation3] sm:$0xff] %vm227, 0.0
          %230 = vst [vmem:[#allocation4] sm:$0xff] 0.0
        $region40: #{tpu_custom_call.1} parent=27 // pred_fallthru
          _
        %s231 = smul.u32 %s29, 8
        %s232 = smul.u32 %s28, 8
        %s233 = sadd.s32 %s232, 7
        %p234 = scmp.le.s32.totalorder %s231, %s233
        // Predicated region
        $region41: #{tpu_custom_call.1} parent=27 // pred_check
          %p235 = pneg %p234
        $region42: #{tpu_custom_call.1} parent=27 // pred_check_branch
          %237 = sbr.rel (%p235) target = $region44
        $region43: #{tpu_custom_call.1} parent=27 // pred_region
          %v238 = vld [vmem:[%s188] sm:$0xff]
          %v239 = vld [vmem:[%s197] sm:$0xff]
          %240 = vmatprep.subr.mxu0 0.0
          %241 = vmatpush1.xpose.msra.mxu0 %v239
          %242 = vmatprep.subr.mxu0 0.0
          %243 = vmatpush1.xpose.msra.mxu0 0.0
          %244 = vmatprep.subr.mxu0 0.0
          %245 = vmatpush1.xpose.msra.mxu0 0.0
          %246 = vmatprep.subr.mxu0 0.0
          %247 = vmatpush1.xpose.msra.mxu0 0.0
          %248 = vmatprep.subr.mxu0 0.0
          %249 = vmatpush1.xpose.msra.mxu0 0.0
          %250 = vmatprep.subr.mxu0 0.0
          %251 = vmatpush1.xpose.msra.mxu0 0.0
          %252 = vmatprep.subr.mxu0 0.0
          %253 = vmatpush1.xpose.msra.mxu0 0.0
          %254 = vmatprep.subr.mxu0 0.0
          %255 = vmatpush1.xpose.msra.mxu0 0.0
          %256 = vmatprep.subr.mxu0 0.0
          %257 = vmatpush1.xpose.msra.mxu0 0.0
          %258 = vmatprep.subr.mxu0 0.0
          %259 = vmatpush1.xpose.msra.mxu0 0.0
          %260 = vmatprep.subr.mxu0 0.0
          %261 = vmatpush1.xpose.msra.mxu0 0.0
          %262 = vmatprep.subr.mxu0 0.0
          %263 = vmatpush1.xpose.msra.mxu0 0.0
          %264 = vmatprep.subr.mxu0 0.0
          %265 = vmatpush1.xpose.msra.mxu0 0.0
          %266 = vmatprep.subr.mxu0 0.0
          %267 = vmatpush1.xpose.msra.mxu0 0.0
          %268 = vmatprep.subr.mxu0 0.0
          %269 = vmatpush1.xpose.msra.mxu0 0.0
          %270 = vmatprep.subr.mxu0 0.0
          %271 = vmatpush1.xpose.msra.mxu0 0.0
          %272 = vmatprep.subr.mxu0 0.0
          %273 = vmatpush1.xpose.msra.mxu0 0.0
          %274 = vmatprep.subr.mxu0 0.0
          %275 = vmatpush1.xpose.msra.mxu0 0.0
          %276 = vmatprep.subr.mxu0 0.0
          %277 = vmatpush1.xpose.msra.mxu0 0.0
          %278 = vmatprep.subr.mxu0 0.0
          %279 = vmatpush1.xpose.msra.mxu0 0.0
          %280 = vmatprep.subr.mxu0 0.0
          %281 = vmatpush1.xpose.msra.mxu0 0.0
          %282 = vmatprep.subr.mxu0 0.0
          %283 = vmatpush1.xpose.msra.mxu0 0.0
          %284 = vmatprep.subr.mxu0 0.0
          %285 = vmatpush1.xpose.msra.mxu0 0.0
          %286 = vmatprep.subr.mxu0 0.0
          %287 = vmatpush1.xpose.msra.mxu0 0.0
          %288 = vmatprep.subr.mxu0 0.0
          %289 = vmatpush1.xpose.msra.mxu0 0.0
          %290 = vmatprep.subr.mxu0 0.0
          %291 = vmatpush1.xpose.msra.mxu0 0.0
          %292 = vmatprep.subr.mxu0 0.0
          %293 = vmatpush1.xpose.msra.mxu0 0.0
          %294 = vmatprep.subr.mxu0 0.0
          %295 = vmatpush1.xpose.msra.mxu0 0.0
          %296 = vmatprep.subr.mxu0 0.0
          %297 = vmatpush1.xpose.msra.mxu0 0.0
          %298 = vmatprep.subr.mxu0 0.0
          %299 = vmatpush1.xpose.msra.mxu0 0.0
          %300 = vmatprep.subr.mxu0 0.0
          %301 = vmatpush1.xpose.msra.mxu0 0.0
          %302 = vmatprep.subr.mxu0 0.0
          %303 = vmatpush1.xpose.msra.mxu0 0.0
          %304 = vmatprep.mubr.f32.mxu0 0.0
          %305 = vmatmul.mubr.f32.gmra.mrb[0].mxu0 %v238
          %v306 = vpop.f32.mrb[0].mxu0
          %v307 = vadd.f32 0.0, %v306
          %v308 = vpop.f32.mrb[0].mxu0
          %309 = vdwg.mxu0
          %v310 = vlaneseq
          %v311 = vshrl.u32 %v310, 7
          %v312 = vstv %s232
          %v313 = vadd.s32 %v311, %v312
          %v314 = vlaneseq
          %v315 = vand.u32 %v314, 127
          %v316 = vstv %s231
          %v317 = vadd.s32 %v315, %v316
          %vm318 = vcmp.le.s32.totalorder %v317, %v313
          %v319 = vsel %vm318, %v307, -1e+20
          %v320 = vld [vmem:[#allocation2] sm:$0xff]
          %vm321 = vcmask 64512
          %v322 = vsel %vm321, %v319, -inf
          %323 = vmax.xlane.f32.xlu0 %v322
          %v324 = vpop.xlane.xlu0 %323
          %v325 = vmax.f32 %v320, %v324
          %v326 = vsub.f32 %v320, %v325
          %v327 = vmul.f32 %v326, 1.442695
          %v328 = vpow.pop %v327
          %330 = vset.pattern.permute.xlu0 0
          %331 = vperm.xlu0 %330, %v325
          %v332 = vpop.permute.xlu0 %331
          %v334 = vsub.f32 %v319, %v332
          %v335 = vmul.f32 %v334, 1.442695
          %v336 = vpow.pop %v335
          %v337 = vld [vmem:[#allocation3] sm:$0xff]
          %v338 = vmul.f32 %v328, %v337
          %v339 = vsel %vm321, %v336, 0.0
          %340 = vadd.xlane.f32.xlu0 %v339
          %v341 = vpop.xlane.xlu0 %340
          %v342 = vadd.f32 %v338, %v341
          %vm343 = vcmask 7168
          %344 = vst.msk [vmem:[#allocation3] sm:$0xff] %vm343, %v342
          %v345 = vld [vmem:[#allocation4] sm:$0xff]
          %347 = vset.pattern.permute.xlu0 0
          %348 = vperm.xlu0 %347, %v328
          %v349 = vpop.permute.xlu0 %348
          %v351 = vmul.f32 %v349, %v345
          %v353 = vsel %vm321, %v336, 0
          %355 = vmatprep.subr.mxu0 0.0
          %356 = vmatpush1.msra.mxu0 %v239
          %357 = vmatprep.subr.mxu0 0.0
          %358 = vmatpush1.msra.mxu0 0.0
          %359 = vmatprep.subr.mxu0 0.0
          %360 = vmatpush1.msra.mxu0 0.0
          %361 = vmatprep.subr.mxu0 0.0
          %362 = vmatpush1.msra.mxu0 0.0
          %363 = vmatprep.subr.mxu0 0.0
          %364 = vmatpush1.msra.mxu0 0.0
          %365 = vmatprep.subr.mxu0 0.0
          %366 = vmatpush1.msra.mxu0 0.0
          %367 = vmatprep.subr.mxu0 0.0
          %368 = vmatpush1.msra.mxu0 0.0
          %369 = vmatprep.subr.mxu0 0.0
          %370 = vmatpush1.msra.mxu0 0.0
          %371 = vmatprep.subr.mxu0 0.0
          %372 = vmatpush1.msra.mxu0 0.0
          %373 = vmatprep.subr.mxu0 0.0
          %374 = vmatpush1.msra.mxu0 0.0
          %375 = vmatprep.subr.mxu0 0.0
          %376 = vmatpush1.msra.mxu0 0.0
          %377 = vmatprep.subr.mxu0 0.0
          %378 = vmatpush1.msra.mxu0 0.0
          %379 = vmatprep.subr.mxu0 0.0
          %380 = vmatpush1.msra.mxu0 0.0
          %381 = vmatprep.subr.mxu0 0.0
          %382 = vmatpush1.msra.mxu0 0.0
          %383 = vmatprep.subr.mxu0 0.0
          %384 = vmatpush1.msra.mxu0 0.0
          %385 = vmatprep.subr.mxu0 0.0
          %386 = vmatpush1.msra.mxu0 0.0
          %387 = vmatprep.subr.mxu0 0.0
          %388 = vmatpush1.msra.mxu0 0.0
          %389 = vmatprep.subr.mxu0 0.0
          %390 = vmatpush1.msra.mxu0 0.0
          %391 = vmatprep.subr.mxu0 0.0
          %392 = vmatpush1.msra.mxu0 0.0
          %393 = vmatprep.subr.mxu0 0.0
          %394 = vmatpush1.msra.mxu0 0.0
          %395 = vmatprep.subr.mxu0 0.0
          %396 = vmatpush1.msra.mxu0 0.0
          %397 = vmatprep.subr.mxu0 0.0
          %398 = vmatpush1.msra.mxu0 0.0
          %399 = vmatprep.subr.mxu0 0.0
          %400 = vmatpush1.msra.mxu0 0.0
          %401 = vmatprep.subr.mxu0 0.0
          %402 = vmatpush1.msra.mxu0 0.0
          %403 = vmatprep.subr.mxu0 0.0
          %404 = vmatpush1.msra.mxu0 0.0
          %405 = vmatprep.subr.mxu0 0.0
          %406 = vmatpush1.msra.mxu0 0.0
          %407 = vmatprep.subr.mxu0 0.0
          %408 = vmatpush1.msra.mxu0 0.0
          %409 = vmatprep.subr.mxu0 0.0
          %410 = vmatpush1.msra.mxu0 0.0
          %411 = vmatprep.subr.mxu0 0.0
          %412 = vmatpush1.msra.mxu0 0.0
          %413 = vmatprep.subr.mxu0 0.0
          %414 = vmatpush1.msra.mxu0 0.0
          %415 = vmatprep.subr.mxu0 0.0
          %416 = vmatpush1.msra.mxu0 0.0
          %417 = vmatprep.subr.mxu0 0.0
          %418 = vmatpush1.msra.mxu0 0.0
          %419 = vmatprep.mubr.f32.mxu0 0.0
          %420 = vmatmul.mubr.f32.gmra.mrb[0].mxu0 %v353
          %v421 = vpop.f32.mrb[0].mxu0
          %v422 = vadd.f32 0.0, %v421
          %v423 = vpop.f32.mrb[0].mxu0
          %424 = vdwg.mxu0
          %v425 = vadd.f32 %v351, %v422
          %426 = vst [vmem:[#allocation4] sm:$0xff] %v425
          %427 = vst.msk [vmem:[#allocation2] sm:$0xff] %vm343, %v325
        $region44: #{tpu_custom_call.1} parent=27 // pred_fallthru
          _
        // Predicated region
        $region45: #{tpu_custom_call.1} parent=27 // pred_check
          %p428 = pneg %p223
        $region46: #{tpu_custom_call.1} parent=27 // pred_check_branch
          %430 = sbr.rel (%p428) target = $region48
        $region47: #{tpu_custom_call.1} parent=27 // pred_region
          %v431 = vld [vmem:[#allocation3] sm:$0xff]
          %v432 = vrcp.pop %v431
          %v433 = vld [vmem:[#allocation4] sm:$0xff]
          %435 = vset.pattern.permute.xlu0 0
          %436 = vperm.xlu0 %435, %v432
          %v437 = vpop.permute.xlu0 %436
          %v439 = vmul.f32 %v433, %v437
          %440 = vst [vmem:[%s222] sm:$0xff] %v439
        $region48: #{tpu_custom_call.1} parent=27 // pred_fallthru
          _
        %s441 = sand.u32 %s107, 1
        %s442 = scalar_lea.sflag [#allocation7], %s441
        %s443 = sand.u32 %s107, 1
        %s444 = smul.addr %s443, 8
        %s445 = scalar_lea.vmem [#allocation10], %s444
        // Predicated region
        $region49: #{tpu_custom_call.1} parent=27 // pred_check
          %p446 = pneg %p117
        $region50: #{tpu_custom_call.1} parent=27 // pred_check_branch
          %448 = sbr.rel (%p446) target = $region52
        $region51: #{tpu_custom_call.1} parent=27 // pred_region
          %s450 = ssub.s32 128, 128
          %451 = vsyncadd %s442, %s450
          %s452 = sadd.s32 %s28, %s27
          %s453 = smul.addr %s452, 128
          %s454 = scalar_lea.hbm %s2, %s453
          %s456 = sshll.u32 %s445, 4
          %s457 = int_to_ptr.vmem [resolvable:$true] %s456
          %459 = dma.vmem_to_hbm [thread:$0]  %s457, 128, %s454, %s442
        $region52: #{tpu_custom_call.1} parent=27 // pred_fallthru
          _
      $region28: #{tpu_custom_call.1} parent=5 // pred_fallthru
        _
      %p460 = scmp.le.s32.totalorder 2, %s17
      // Predicated region
      $region53: #{tpu_custom_call.1} parent=5 // pred_check
        %p461 = pneg %p460
      $region54: #{tpu_custom_call.1} parent=5 // pred_check_branch
        %463 = sbr.rel (%p461) target = $region56
      $region55: #{tpu_custom_call.1} parent=5 // pred_region
        %s464 = ssub.s32 %s17, 2
        // Predicated region
        $region57: #{tpu_custom_call.1} parent=55 // pred_check
          %p465 = pneg %p123
        $region58: #{tpu_custom_call.1} parent=55 // pred_check_branch
          %467 = sbr.rel (%p465) target = $region60
        $region59: #{tpu_custom_call.1} parent=55 // pred_region
          %s468 = sand.u32 %s108, 1
          %s469 = scalar_lea.sflag [#allocation7], %s468
          %s470 = sand.u32 %s108, 1
          %s471 = smul.addr %s470, 8
          %s472 = scalar_lea.vmem [#allocation10], %s471
          %473 = dma.done %s469, 128
        $region60: #{tpu_custom_call.1} parent=55 // pred_fallthru
          _
      $region56: #{tpu_custom_call.1} parent=5 // pred_fallthru
        _
    $region6: #{tpu_custom_call.1} parent=1 // loop_footer
      %s21 = sadd.s32 1, %s17
    $region7: #{tpu_custom_call.1} parent=1 // loop_footer_branch
      %16 = sbr.rel target = $region3
    $region8: #{tpu_custom_call.1} parent=1 // loop_exit
      _
    %474 = vsyncpa [#allocation6], 1
    %s475 = scalar_lea.sflag [#allocation6], 1
    %476 = vsyncpa %s475, 1
    %477 = vsyncpa [#allocation9], 1
    %s478 = scalar_lea.sflag [#allocation9], 1
    %479 = vsyncpa %s478, 1
    %480 = vsyncpa [#allocation7], 1
    %s481 = scalar_lea.sflag [#allocation7], 1
    %482 = vsyncpa %s481, 1

</llo_original>
